<compile_context>
chip_gen: v5e
topology: v5e:2x2
jax: 0.10.0
libtpu: 0.0.40
codegen_flags: <defaults>
</compile_context>

<pallas_src>
import functools

import jax
import jax.numpy as jnp
from jax.experimental import pallas as pl
from jax.experimental.pallas import tpu as pltpu


def _label_smoothing_kernel(t_ref, o_ref, *, scale, offset):
    # Elementwise hot path: cast labels -> f32, scale and shift (VPU only).
    # scale/offset are Python floats folded at trace time.
    o_ref[...] = t_ref[...].astype(jnp.float32) * scale + offset


def _round_up(x, m):
    return ((x + m - 1) // m) * m


def label_smoothing(
    target,
    num_classes,
    eps=0.1,
    *,
    target_block_elems=512 * 1024,
    small_input_threshold=64 * 1024,
):
    """(1 - eps) * target + eps / num_classes, elementwise.

    target: (integer) array of any shape. Returns float32 of the same shape.
    """
    scale = float(1.0 - eps)
    offset = float(eps) / float(num_classes)

    orig_shape = target.shape
    n = 1
    for d in orig_shape:
        n *= int(d)

    # Keep narrow native int dtypes (cast happens in-kernel on the VPU).
    # Only >4-byte ints are down-cast (i64 support on TPU is limited; class
    # indices always fit in int32 anyway).
    if target.dtype.itemsize > 4:
        target = target.astype(jnp.int32)

    # Small-input bail-out: a fused XLA elementwise op beats kernel launch +
    # pad/slice overhead, and a 1-step grid can't use v7x's second core anyway.
    if n < small_input_threshold:
        return target.astype(jnp.float32) * scale + offset

    in_itemsize = target.dtype.itemsize
    # Sublane multiple satisfying the native tiling of the input dtype:
    # int32/f32 -> 8, int16/bf16 -> 16, int8 -> 32. (f32 output needs only 8.)
    sub = max(8, 32 // in_itemsize)

    # Lane-dense layout: last dim a (large) multiple of 128 -> unmasked stores.
    if n % 1024 == 0:
        lanes = 1024
    elif n % 128 == 0:
        lanes = 128
    else:
        lanes = 1024 if n >= 1024 else 128

    rows = pl.cdiv(n, lanes)
    padded = rows * lanes

    flat = target.reshape(-1)
    if padded != n:
        # Single pad pass, only for lane-ragged sizes; tail sliced off below.
        flat = jnp.pad(flat, (0, padded - n))
    x2d = flat.reshape(rows, lanes)

    # Block sizing.
    if rows <= 2 * sub:
        # Single full-extent block (block dim == array dim is always legal,
        # regardless of the (sub,128) divisibility rule).
        block_rows = rows
    else:
        # Largest block under ~target_block_elems elements (rows multiple of sub):
        # ~2 MiB/buffer, ~8 MiB resident with double buffering -> safe on v5e's
        # 16 MiB scoped VMEM and comfortably within v6e/v7x budgets.
        max_block_rows = max(sub, (target_block_elems // lanes) // sub * sub)
        block_rows = min(max_block_rows, _round_up(rows, sub))
        # Keep >= 2 grid steps so ("parallel",) shards across v7x's 2 TCs.
        block_rows = min(block_rows, _round_up(pl.cdiv(rows, 2), sub))
        block_rows = max(block_rows, sub)

    grid = (pl.cdiv(rows, block_rows),)  # ragged last block is masked by Pallas

    kernel = functools.partial(_label_smoothing_kernel, scale=scale, offset=offset)

    out2d = pl.pallas_call(
        kernel,
        out_shape=jax.ShapeDtypeStruct((rows, lanes), jnp.float32),
        grid=grid,
        in_specs=[pl.BlockSpec((block_rows, lanes), lambda i: (i, 0))],
        out_specs=pl.BlockSpec((block_rows, lanes), lambda i: (i, 0)),
        compiler_params=pltpu.CompilerParams(
            # Grid axis is embarrassingly parallel -> shardable across v7x's 2 TCs.
            dimension_semantics=("parallel",),
        ),
        cost_estimate=pl.CostEstimate(
            flops=2 * n, transcendentals=0, bytes_accessed=n * (in_itemsize + 4)
        ),
    )(x2d)

    if padded == n:
        # Fast path: no pad happened, no slice needed (reshape is layout-free).
        return out2d.reshape(orig_shape)
    return out2d.reshape(-1)[:n].reshape(orig_shape)


if __name__ == "__main__":
    num_classes = 10
    eps = 0.1

    key = jax.random.PRNGKey(0)
    k1, k2, k3 = jax.random.split(key, 3)

    # 1) Small label tensor (batch=8 x 128 class indices): default path takes
    #    the small-input bail-out (fused XLA elementwise).
    t1 = jax.random.randint(k1, (8, 128), 0, num_classes, dtype=jnp.int32)
    r1 = (1.0 - eps) * t1.astype(jnp.float32) + eps / num_classes
    o1 = jax.block_until_ready(label_smoothing(t1, num_classes, eps))
    assert o1.shape == t1.shape and o1.dtype == jnp.float32
    assert jnp.allclose(o1, r1, atol=1e-6), "mismatch (bail-out path)"

    # 2) Same tensor forced through the Pallas kernel (no-pad / no-slice path).
    o2 = jax.block_until_ready(
        label_smoothing(t1, num_classes, eps, small_input_threshold=0)
    )
    assert o2.shape == t1.shape and o2.dtype == jnp.float32
    assert jnp.allclose(o2, r1, atol=1e-6), "mismatch (kernel, lane-friendly path)"

    # 3) Lane-ragged shape forced through the kernel (single pad + tail slice).
    t3 = jax.random.randint(k2, (7, 100), 0, num_classes, dtype=jnp.int32)
    r3 = (1.0 - eps) * t3.astype(jnp.float32) + eps / num_classes
    o3 = jax.block_until_ready(
        label_smoothing(t3, num_classes, eps, small_input_threshold=0)
    )
    assert o3.shape == t3.shape and o3.dtype == jnp.float32
    assert jnp.allclose(o3, r3, atol=1e-6), "mismatch (kernel, ragged path)"

    # 4) Narrow int8 labels through the kernel (in-kernel cast, (32,128) tiling).
    t4 = jax.random.randint(k3, (256, 128), 0, num_classes, dtype=jnp.int8)
    r4 = (1.0 - eps) * t4.astype(jnp.float32) + eps / num_classes
    o4 = jax.block_until_ready(
        label_smoothing(t4, num_classes, eps, small_input_threshold=0)
    )
    assert o4.shape == t4.shape and o4.dtype == jnp.float32
    assert jnp.allclose(o4, r4, atol=1e-6), "mismatch (kernel, int8 path)"

    print("KERNEL_OK")
</pallas_src>

<mosaic_0001>
module attributes {stable_mosaic.version = 11 : i64} {
  func.func @_label_smoothing_kernel(%arg0: i32, %arg1: memref<1x1024xi32, #tpu.memory_space<vmem>>, %arg2: memref<1x1024xf32, #tpu.memory_space<vmem>>) attributes {dimension_semantics = [#tpu.dimension_semantics<parallel>], iteration_bounds = array<i64: 1>, scalar_prefetch = 0 : i64, scratch_operands = 0 : i64, tpu.core_type = #tpu.core_type<tc>, window_params = [{transform_indices = @transform_0, window_bounds = array<i64: 1, 1024>}, {transform_indices = @transform_1, window_bounds = array<i64: 1, 1024>}]} {
    %c0 = arith.constant 0 : index
    %c0_0 = arith.constant 0 : index
    %0 = vector.load %arg1[%c0, %c0_0] : memref<1x1024xi32, #tpu.memory_space<vmem>>, vector<1x1024xi32>
    %1 = arith.sitofp %0 : vector<1x1024xi32> to vector<1x1024xf32>
    %cst = arith.constant 0.899999976 : f32
    %2 = vector.broadcast %cst : f32 to vector<1x1024xf32>
    %3 = arith.mulf %1, %2 : vector<1x1024xf32>
    %cst_1 = arith.constant 0.00999999977 : f32
    %4 = vector.broadcast %cst_1 : f32 to vector<1x1024xf32>
    %5 = arith.addf %3, %4 : vector<1x1024xf32>
    %c0_2 = arith.constant 0 : index
    %c0_3 = arith.constant 0 : index
    %6 = vector.load %arg2[%c0_2, %c0_3] : memref<1x1024xf32, #tpu.memory_space<vmem>>, vector<1x1024xf32>
    tpu.vector_store %arg2[%c0_2, %c0_3], %5 {strides = array<i32>} : memref<1x1024xf32, #tpu.memory_space<vmem>>, vector<1x1024xf32>,
    return
  }
  func.func @transform_0(%arg0: i32) -> (i32, i32) {
    %c0_i32 = arith.constant 0 : i32
    %c0_i32_0 = arith.constant 0 : i32
    return %arg0, %c0_i32 : i32, i32
  }
  func.func @transform_1(%arg0: i32) -> (i32, i32) {
    %c0_i32 = arith.constant 0 : i32
    %c0_i32_0 = arith.constant 0 : i32
    return %arg0, %c0_i32 : i32, i32
  }
}

</mosaic_0001>

<llo_original>
// kernel: tpu_custom_call.1
$region0: #{tpu_custom_call.1}
  #allocation0 [shape = 'u32[]', space=smem, size = 0x4, offset = 0x4, fixed_abs, tag = 'smem constant byte address 0x4 - core index']
  #allocation1 [shape = 'u32[72,128]{1,0:T(1,128)}', space=vmem, size = 0x9000, scoped, tag = 'internal scratch']
  %s0 = inlined_call_operand.hbm [shape: s32[1,1024], index: 0, kind: input, shape index: {}]
  %s1 = inlined_call_operand.hbm [shape: f32[1,1024], index: 1, kind: output, shape index: {}]
  %s2 = sld [smem:[#allocation0]]
  $region18: #{tpu_custom_call.1} parent=0
    _
  %s4 = ssub.s32 1, %s2
  %s5 = scalar_select 0, %s4, %s2
  $region1: #{tpu_custom_call.1} parent=0
    #allocation2 [shape = 'u8[4096]{0}', space=vmem, size = 0x1000, scoped, tag = 'input window, operand 0, single buffered']
    #allocation3 [shape = 's32[1]{0}', space=sflag, size = 0x4, scoped, tag = 'scoped memory for tpu_custom_call.1']
    #allocation4 [shape = 's32[1]{0}', space=sflag, size = 0x4, scoped, tag = 'scoped memory for tpu_custom_call.1']
    #allocation5 [shape = 'u8[4096]{0}', space=vmem, size = 0x1000, scoped, tag = 'output window, operand 0, single buffered']
    %6 = vsyncpa [#allocation3], 0
    %7 = vsyncpa [#allocation4], 0
    // Predicated region
    $region2: #{tpu_custom_call.1} parent=1 // pred_check
      _
    $region3: #{tpu_custom_call.1} parent=1 // pred_check_branch
      %9 = sbr.rel (0) target = $region5
    $region4: #{tpu_custom_call.1} parent=1 // pred_region
      %11 = vsyncadd [#allocation3], 0
      %s13 = sshll.u32 %s0, 4
      %s14 = int_to_ptr.hbm [resolvable:$true] %s13
      %s15 = sshll.u32 [#allocation2], 4
      %s16 = int_to_ptr.vmem [resolvable:$true] %s15
      %18 = dma.hbm_to_vmem [thread:$0]  %s14, 128, %s16, [#allocation3]
    $region5: #{tpu_custom_call.1} parent=1 // pred_fallthru
      _
    // Predicated region
    $region6: #{tpu_custom_call.1} parent=1 // pred_check
      _
    $region7: #{tpu_custom_call.1} parent=1 // pred_check_branch
      %20 = sbr.rel (0) target = $region9
    $region8: #{tpu_custom_call.1} parent=1 // pred_region
      %22 = dma.done [#allocation3], 128
    $region9: #{tpu_custom_call.1} parent=1 // pred_fallthru
      _
    %v23 = vld [vmem:[#allocation2] sm:$0xff]
    %v24 = vcvt.s32.f32 %v23
    %v25 = vmul.f32 %v24, 0.9
    %v26 = vadd.f32 %v25, 0.01
    %27 = vst [vmem:[#allocation5] sm:$0xff] %v26
    // Predicated region
    $region10: #{tpu_custom_call.1} parent=1 // pred_check
      _
    $region11: #{tpu_custom_call.1} parent=1 // pred_check_branch
      %29 = sbr.rel (0) target = $region13
    $region12: #{tpu_custom_call.1} parent=1 // pred_region
      %31 = vsyncadd [#allocation4], 0
      %s33 = sshll.u32 [#allocation5], 4
      %s34 = int_to_ptr.vmem [resolvable:$true] %s33
      %s35 = sshll.u32 %s1, 4
      %s36 = int_to_ptr.hbm [resolvable:$true] %s35
      %38 = dma.vmem_to_hbm [thread:$0]  %s34, 128, %s36, [#allocation4]
    $region13: #{tpu_custom_call.1} parent=1 // pred_fallthru
      _
    // Predicated region
    $region14: #{tpu_custom_call.1} parent=1 // pred_check
      _
    $region15: #{tpu_custom_call.1} parent=1 // pred_check_branch
      %40 = sbr.rel (0) target = $region17
    $region16: #{tpu_custom_call.1} parent=1 // pred_region
      %42 = dma.done [#allocation4], 128
    $region17: #{tpu_custom_call.1} parent=1 // pred_fallthru
      _
    %43 = vsyncpa [#allocation3], 1
    %44 = vsyncpa [#allocation4], 1

</llo_original>
